<compile_context>
chip_gen: v7x
topology: tpu7x:2x2x1
jax: 0.10.0
libtpu: 0.0.40
codegen_flags: <defaults>
</compile_context>

<pallas_src>
import functools

import jax
import jax.numpy as jnp
from jax.experimental import pallas as pl
from jax.experimental.pallas import tpu as pltpu

EPS = 1e-08


def _focal_ce_kernel(pred_ref, tgt_ref, w_ref, out_ref, *,
                     gamma, tile, hw, tiles_per_split, needs_mask):
    """One (batch, split, tile) step of the focal cross-entropy sum.

    pred_ref: (1, C, TILE) float    logits (channels on sublanes, pixels on lanes)
    tgt_ref : (1, 1, TILE) int32    class indices
    w_ref   : (C, 1)       float32  class weights pre-scaled by (-alpha)
    out_ref : (1, 1, TILE) float32  per-lane running sum for this (batch, split)
    """
    t = pl.program_id(2)

    @pl.when(t == 0)
    def _():
        out_ref[...] = jnp.zeros_like(out_ref)

    z = pred_ref[0].astype(jnp.float32)            # (C, TILE)
    tgt = tgt_ref[0]                               # (1, TILE) int32

    # Numerically-stable softmax over the channel (sublane) axis.
    m = jnp.max(z, axis=0, keepdims=True)          # (1, TILE)
    zm = z - m
    e = jnp.exp(zm)                                # one transcendental / element
    ssum = jnp.sum(e, axis=0, keepdims=True)       # (1, TILE)
    inv = pl.reciprocal(ssum, approx=True)         # per-pixel, EUP slot (free)

    # q = 1 - (softmax + EPS); softmax+EPS itself is never materialized.
    q = (1.0 - EPS) - e * inv                      # (C, TILE)
    # log(softmax) via the log-sum-exp identity: one log per pixel instead of
    # one per element.  (Differs from log(softmax + EPS) only at the ~EPS level.)
    logp = zm - jnp.log(ssum)                      # (C, TILE)

    if gamma == 2.0:
        wgt = q * q                                # VPU square, no EUP pow
    elif float(gamma).is_integer() and 0 < gamma <= 4:
        wgt = q
        for _ in range(int(gamma) - 1):
            wgt = wgt * q
    else:
        wgt = jnp.power(jnp.maximum(q, 0.0), gamma)

    # w_ref already holds (-alpha) * class_weights (folded in the wrapper).
    focal = wgt * logp * w_ref[...]                # (C, TILE)

    # sum_c (one_hot + EPS) * focal  =  focal[target]  +  EPS * sum_c focal
    # -> one select per element plus two sublane (XLU) reductions; no one_hot
    #    materialization / cast / extra per-element multiplies on the VALU.
    ch = jax.lax.broadcasted_iota(jnp.int32, focal.shape, 0)
    picked = jnp.where(ch == tgt, focal, 0.0)
    row = (jnp.sum(picked, axis=0, keepdims=True) +
           EPS * jnp.sum(focal, axis=0, keepdims=True))   # (1, TILE)

    if needs_mask:
        # Tail lanes of the last block read out-of-bounds garbage; everything
        # above is lane-local, so masking the final per-pixel row is enough.
        # pix0 uses the logical (split, tile) indices, which now always equal
        # the block index (nsplit divides num_tiles, no clamp) -- keep that
        # invariant if this index math is refactored.
        s = pl.program_id(1)
        pix0 = (s * tiles_per_split + t) * tile
        lane = jax.lax.broadcasted_iota(jnp.int32, (1, tile), 1)
        row = jnp.where(pix0 + lane < hw, row, 0.0)

    out_ref[...] += row[None]


def _default_nsplit():
    """2-way split on dual-TensorCore chips (v7x); 1 on v5e/v6e where the grid
    is a serial loop on a single TC and an extra split only adds steps."""
    try:
        kind = jax.devices()[0].device_kind.lower()
    except Exception:
        return 1
    return 2 if "v7" in kind else 1


def _in_spec(shape, index_map, depth):
    """Input BlockSpec, with >2-deep pipelining (pl.Buffered) when available."""
    if depth > 2 and hasattr(pl, "Buffered"):
        try:
            return pl.BlockSpec(shape, index_map, pipeline_mode=pl.Buffered(depth))
        except TypeError:            # older jax without pipeline_mode on BlockSpec
            pass
    return pl.BlockSpec(shape, index_map)


def focal_cross_entropy_loss(prediction, target, class_weights, gamma=2.0,
                             alpha=1.0, tile_hw=32768, nsplit=None,
                             hbm_dtype=None):
    """prediction: (B, C, H, W); target: (B, H, W) int -> scalar mean focal loss.

    hbm_dtype: optional dtype the logits are staged through HBM/VMEM in (e.g.
      jnp.bfloat16 to halve input bandwidth on HBM-bound v5e/v6e).  The kernel
      always computes in float32; None keeps the input dtype so the result
      matches the reference module's f32 math.
    """
    b, c, h, w = prediction.shape
    hw = h * w
    n = b * hw

    if hbm_dtype is not None and prediction.dtype != jnp.dtype(hbm_dtype):
        prediction = prediction.astype(hbm_dtype)

    # Native NCHW layout: free reshapes only (no transpose, no concatenate);
    # channels land on sublanes, pixels on lanes -> lane-dense vregs.
    pred = prediction.reshape(b, c, hw)
    tgt = target.reshape(b, 1, hw).astype(jnp.int32)
    w_neg = (class_weights.astype(jnp.float32) * (-float(alpha))).reshape(c, 1)

    # ---- tile selection -----------------------------------------------------
    # Big tiles amortize the ~0.35us per-grid-step overhead.  Cap the 3-deep
    # input working set at ~20 MiB so the same tile is safe on v7x (64 MiB
    # physical VMEM / 32 MiB default scoped) as well as v5e/v6e (128 MiB).
    pred_bytes = jnp.dtype(pred.dtype).itemsize
    lane_bytes = 3 * (c * pred_bytes + 4) + 4       # 3 in-buffers + f32 out row
    vmem_cap = 20 * 1024 * 1024
    tile_cap = max(128, (vmem_cap // lane_bytes // 128) * 128)
    tile_req = min(int(tile_hw), tile_cap)
    if hw <= tile_req:
        tile = hw                                   # one full-width block per batch
    else:
        tile = max(128, (tile_req // 128) * 128)    # lane-aligned streaming tile
    num_tiles = (hw + tile - 1) // tile

    # ---- split axis (dual-TC sharding on v7x) --------------------------------
    if nsplit is None:
        nsplit = _default_nsplit()
    nsplit = max(1, min(int(nsplit), num_tiles))
    while num_tiles % nsplit:
        nsplit -= 1        # only divisors: no clamped duplicate/overshoot steps
    tiles_per_split = num_tiles // nsplit
    needs_mask = (num_tiles * tile) != hw
    buffer_depth = 3 if tiles_per_split >= 3 else 2

    def data_map(bi, si, ti):
        return (bi, 0, si * tiles_per_split + ti)

    kernel = functools.partial(
        _focal_ce_kernel, gamma=float(gamma), tile=tile, hw=hw,
        tiles_per_split=tiles_per_split, needs_mask=needs_mask)

    # Only raise the scoped-VMEM limit when the estimate could exceed the
    # smallest default (16 MiB on v5e); keep it well under v7x's 64 MiB.
    est_vmem = buffer_depth * (c * pred_bytes + 4) * tile + 2 * 4 * tile + 4 * c
    cp_kwargs = dict(dimension_semantics=("parallel", "parallel", "arbitrary"))
    # TODO(synk): on v7x, promote the split axis to pltpu.CORE_PARALLEL if an
    # xprof trace shows one TensorCore idle (plain "parallel" usually suffices).
    if est_vmem > 12 * 1024 * 1024:
        cp_kwargs["vmem_limit_bytes"] = int(min(48 * 1024 * 1024,
                                                est_vmem + (8 << 20)))

    partial = pl.pallas_call(
        kernel,
        out_shape=jax.ShapeDtypeStruct((b * nsplit, 1, tile), jnp.float32),
        grid_spec=pltpu.PrefetchScalarGridSpec(
            num_scalar_prefetch=0,
            grid=(b, nsplit, tiles_per_split),
            in_specs=[
                _in_spec((1, c, tile), data_map, buffer_depth),
                _in_spec((1, 1, tile), data_map, buffer_depth),
                pl.BlockSpec((c, 1), lambda bi, si, ti: (0, 0)),
            ],
            out_specs=pl.BlockSpec(
                (1, 1, tile), lambda bi, si, ti: (bi * nsplit + si, 0, 0)),
        ),
        compiler_params=pltpu.CompilerParams(**cp_kwargs),
    )(pred, tgt, w_neg)

    # Cross-lane reduce + mean happen here on the tiny lane-dense partials.
    return (jnp.sum(partial) / n).astype(jnp.float32)


class CrossEntropyLossPallas:
    """Mirrors the PyTorch module's forward for its default use_focal=True path."""

    def __init__(self, class_weights, ignore_index=255, use_top_k=False,
                 top_k_ratio=1.0, future_discount=1.0, use_focal=True,
                 gamma=2.0, alpha=1.0, hbm_dtype=None):
        self.class_weights = class_weights
        # ignore_index / use_top_k only affect the non-focal branch in the
        # reference module; the focal path (implemented here) ignores them too.
        self.ignore_index = ignore_index
        self.use_top_k = use_top_k
        self.top_k_ratio = top_k_ratio
        self.future_discount = future_discount
        self.use_focal = use_focal
        self.gamma = gamma
        self.alpha = alpha
        self.hbm_dtype = hbm_dtype   # set to jnp.bfloat16 on HBM-bound v5e/v6e

    def __call__(self, prediction, target):
        if not self.use_focal:
            # TODO(synk): non-focal branch (weighted CE + optional top-k sort) not
            # implemented; the module's default config uses the focal path.
            raise NotImplementedError
        return focal_cross_entropy_loss(prediction, target, self.class_weights,
                                        gamma=self.gamma, alpha=self.alpha,
                                        hbm_dtype=self.hbm_dtype)


def _reference_loss(prediction, target, class_weights, gamma, alpha):
    c = prediction.shape[1]
    p = jax.nn.softmax(prediction.astype(jnp.float32), axis=1) + EPS
    one_hot = (jnp.arange(c)[None, :, None, None] ==
               target[:, None, :, :]).astype(jnp.float32)
    focal = (-alpha) * jnp.power(1.0 - p, gamma) * jnp.log(p) * \
        class_weights[None, :, None, None].astype(jnp.float32)
    return jnp.mean(jnp.sum((one_hot + EPS) * focal, axis=1))


if __name__ == "__main__":
    # Tolerances: the kernel uses the log-sum-exp identity and
    # pl.reciprocal(approx=True); both stay well inside 1e-3 of the reference.

    # Test 1: module-sized input, default (input-dtype) single-tile path.
    key = jax.random.PRNGKey(0)
    B, C, H, W = 2, 4, 16, 16
    k1, k2, k3 = jax.random.split(key, 3)
    prediction = jax.random.normal(k1, (B, C, H, W), dtype=jnp.float32)
    target = jax.random.randint(k2, (B, H, W), 0, C, dtype=jnp.int32)
    class_weights = jax.random.uniform(k3, (C,), dtype=jnp.float32) + 0.5

    loss_fn = CrossEntropyLossPallas(class_weights, use_focal=True,
                                     gamma=2.0, alpha=1.0)
    loss = loss_fn(prediction, target)
    jax.block_until_ready(loss)
    ref = _reference_loss(prediction, target, class_weights, 2.0, 1.0)
    assert jnp.allclose(loss, ref, rtol=1e-3, atol=1e-6), (loss, ref)

    # Test 2: multi-tile streaming + in-kernel tail mask (H*W % tile != 0) +
    # 3-deep input buffering + bf16 HBM staging (reference gets the same
    # bf16-rounded logits so only the kernel math is being checked).
    B2, C2, H2, W2 = 2, 4, 48, 48
    k4, k5, k6 = jax.random.split(jax.random.PRNGKey(1), 3)
    pred2 = jax.random.normal(k4, (B2, C2, H2, W2), dtype=jnp.float32)
    tgt2 = jax.random.randint(k5, (B2, H2, W2), 0, C2, dtype=jnp.int32)
    cw2 = jax.random.uniform(k6, (C2,), dtype=jnp.float32) + 0.5
    loss2 = focal_cross_entropy_loss(pred2, tgt2, cw2, gamma=2.0, alpha=1.0,
                                     tile_hw=512, nsplit=1,
                                     hbm_dtype=jnp.bfloat16)
    jax.block_until_ready(loss2)
    ref2 = _reference_loss(pred2.astype(jnp.bfloat16).astype(jnp.float32),
                           tgt2, cw2, 2.0, 1.0)
    assert jnp.allclose(loss2, ref2, rtol=3e-3, atol=1e-6), (loss2, ref2)

    # Test 3: 2-way split axis (divisor of num_tiles -> no overshoot steps),
    # odd channel count, integer gamma != 2, and (-alpha) weight folding.
    B3, C3, H3, W3 = 1, 5, 32, 32
    k7, k8, k9 = jax.random.split(jax.random.PRNGKey(2), 3)
    pred3 = jax.random.normal(k7, (B3, C3, H3, W3), dtype=jnp.float32)
    tgt3 = jax.random.randint(k8, (B3, H3, W3), 0, C3, dtype=jnp.int32)
    cw3 = jax.random.uniform(k9, (C3,), dtype=jnp.float32) + 0.5
    loss3 = focal_cross_entropy_loss(pred3, tgt3, cw3, gamma=3.0, alpha=0.7,
                                     tile_hw=256, nsplit=2)
    jax.block_until_ready(loss3)
    ref3 = _reference_loss(pred3, tgt3, cw3, 3.0, 0.7)
    assert jnp.allclose(loss3, ref3, rtol=1e-3, atol=1e-6), (loss3, ref3)

    print("KERNEL_OK")
</pallas_src>

<mosaic_0001>
module attributes {stable_mosaic.version = 11 : i64} {
  func.func @_focal_ce_kernel(%arg0: i32, %arg1: i32, %arg2: i32, %arg3: memref<1x4x256xf32, #tpu.memory_space<vmem>>, %arg4: memref<1x1x256xi32, #tpu.memory_space<vmem>>, %arg5: memref<4x1xf32, #tpu.memory_space<vmem>>, %arg6: memref<1x1x256xf32, #tpu.memory_space<vmem>>) attributes {dimension_semantics = [#tpu.dimension_semantics<parallel>, #tpu.dimension_semantics<parallel>, #tpu.dimension_semantics<arbitrary>], iteration_bounds = array<i64: 2, 1, 1>, scalar_prefetch = 0 : i64, scratch_operands = 0 : i64, tpu.core_type = #tpu.core_type<tc>, window_params = [{transform_indices = @transform_0, window_bounds = array<i64: 1, 4, 256>}, {transform_indices = @transform_1, window_bounds = array<i64: 1, 1, 256>}, {pipeline_mode = #tpu.pipeline_mode<synchronous>, transform_indices = @transform_2, window_bounds = array<i64: 4, 1>}, {transform_indices = @transform_3, window_bounds = array<i64: 1, 1, 256>}]} {
    %c0_i32 = arith.constant 0 : i32
    %0 = arith.cmpi eq, %arg2, %c0_i32 : i32
    %1 = arith.extui %0 : i1 to i32
    %c0_i32_0 = arith.constant 0 : i32
    %2 = arith.cmpi ne, %1, %c0_i32_0 : i32
    scf.if %2 {
      %cst_20 = arith.constant 0.000000e+00 : f32
      %43 = vector.broadcast %cst_20 : f32 to vector<1x1x256xf32>
      %c0_21 = arith.constant 0 : index
      %c0_22 = arith.constant 0 : index
      %c0_23 = arith.constant 0 : index
      %44 = vector.load %arg6[%c0_21, %c0_22, %c0_23] : memref<1x1x256xf32, #tpu.memory_space<vmem>>, vector<1x1x256xf32>
      tpu.vector_store %arg6[%c0_21, %c0_22, %c0_23], %43 {strides = array<i32>} : memref<1x1x256xf32, #tpu.memory_space<vmem>>, vector<1x1x256xf32>,
    } else {
    }
    %c0 = arith.constant 0 : index
    %c0_1 = arith.constant 0 : index
    %c0_2 = arith.constant 0 : index
    %3 = vector.load %arg3[%c0, %c0_1, %c0_2] : memref<1x4x256xf32, #tpu.memory_space<vmem>>, vector<1x4x256xf32>
    %4 = vector.shape_cast %3 : vector<1x4x256xf32> to vector<4x256xf32>
    %c0_3 = arith.constant 0 : index
    %c0_4 = arith.constant 0 : index
    %c0_5 = arith.constant 0 : index
    %5 = vector.load %arg4[%c0_3, %c0_4, %c0_5] : memref<1x1x256xi32, #tpu.memory_space<vmem>>, vector<1x1x256xi32>
    %6 = vector.shape_cast %5 : vector<1x1x256xi32> to vector<1x256xi32>
    %cst = arith.constant dense<0xFF800000> : vector<256xf32>
    %7 = vector.multi_reduction <maximumf>, %4, %cst [0] : vector<4x256xf32> to vector<256xf32>
    %8 = vector.shape_cast %7 : vector<256xf32> to vector<1x256xf32>
    %9 = vector.broadcast %8 : vector<1x256xf32> to vector<4x256xf32>
    %10 = arith.subf %4, %9 : vector<4x256xf32>
    %11 = math.exp %10 : vector<4x256xf32>
    %cst_6 = arith.constant dense<0.000000e+00> : vector<256xf32>
    %12 = vector.multi_reduction <add>, %11, %cst_6 [0] : vector<4x256xf32> to vector<256xf32>
    %13 = vector.shape_cast %12 : vector<256xf32> to vector<1x256xf32>
    %14 = tpu.reciprocal %13 {approx = true} : vector<1x256xf32> -> vector<1x256xf32>
    %15 = vector.broadcast %14 : vector<1x256xf32> to vector<4x256xf32>
    %16 = arith.mulf %11, %15 : vector<4x256xf32>
    %cst_7 = arith.constant 1.000000e+00 : f32
    %17 = vector.broadcast %cst_7 : f32 to vector<4x256xf32>
    %18 = arith.subf %17, %16 : vector<4x256xf32>
    %19 = math.log %13 : vector<1x256xf32>
    %20 = vector.broadcast %19 : vector<1x256xf32> to vector<4x256xf32>
    %21 = arith.subf %10, %20 : vector<4x256xf32>
    %22 = arith.mulf %18, %18 : vector<4x256xf32>
    %23 = arith.mulf %22, %21 : vector<4x256xf32>
    %c0_8 = arith.constant 0 : index
    %c0_9 = arith.constant 0 : index
    %24 = vector.load %arg5[%c0_8, %c0_9] : memref<4x1xf32, #tpu.memory_space<vmem>>, vector<4x1xf32>
    %25 = vector.broadcast %24 : vector<4x1xf32> to vector<4x256xf32>
    %26 = arith.mulf %23, %25 : vector<4x256xf32>
    %27 = tpu.iota {dimensions = array<i32: 0>} : vector<4x256xi32>
    %28 = vector.broadcast %6 : vector<1x256xi32> to vector<4x256xi32>
    %29 = arith.cmpi eq, %27, %28 : vector<4x256xi32>
    %cst_10 = arith.constant 0.000000e+00 : f32
    %30 = vector.broadcast %cst_10 : f32 to vector<4x256xf32>
    %31 = arith.select %29, %26, %30 : vector<4x256xi1>, vector<4x256xf32>
    %cst_11 = arith.constant dense<0.000000e+00> : vector<256xf32>
    %32 = vector.multi_reduction <add>, %31, %cst_11 [0] : vector<4x256xf32> to vector<256xf32>
    %33 = vector.shape_cast %32 : vector<256xf32> to vector<1x256xf32>
    %cst_12 = arith.constant dense<0.000000e+00> : vector<256xf32>
    %34 = vector.multi_reduction <add>, %26, %cst_12 [0] : vector<4x256xf32> to vector<256xf32>
    %35 = vector.shape_cast %34 : vector<256xf32> to vector<1x256xf32>
    %cst_13 = arith.constant 9.99999993E-9 : f32
    %36 = vector.broadcast %cst_13 : f32 to vector<1x256xf32>
    %37 = arith.mulf %36, %35 : vector<1x256xf32>
    %38 = arith.addf %33, %37 : vector<1x256xf32>
    %c0_14 = arith.constant 0 : index
    %c0_15 = arith.constant 0 : index
    %c0_16 = arith.constant 0 : index
    %39 = vector.load %arg6[%c0_14, %c0_15, %c0_16] : memref<1x1x256xf32, #tpu.memory_space<vmem>>, vector<1x1x256xf32>
    %40 = vector.shape_cast %38 : vector<1x256xf32> to vector<1x1x256xf32>
    %41 = arith.addf %39, %40 : vector<1x1x256xf32>
    %c0_17 = arith.constant 0 : index
    %c0_18 = arith.constant 0 : index
    %c0_19 = arith.constant 0 : index
    %42 = vector.load %arg6[%c0_17, %c0_18, %c0_19] : memref<1x1x256xf32, #tpu.memory_space<vmem>>, vector<1x1x256xf32>
    tpu.vector_store %arg6[%c0_17, %c0_18, %c0_19], %41 {strides = array<i32>} : memref<1x1x256xf32, #tpu.memory_space<vmem>>, vector<1x1x256xf32>,
    return
  }
  func.func @transform_0(%arg0: i32, %arg1: i32, %arg2: i32) -> (i32, i32, i32) {
    %c1_i32 = arith.constant 1 : i32
    %0 = arith.muli %arg1, %c1_i32 : i32
    %1 = arith.addi %0, %arg2 : i32
    %c0_i32 = arith.constant 0 : i32
    %c0_i32_0 = arith.constant 0 : i32
    return %arg0, %c0_i32, %1 : i32, i32, i32
  }
  func.func @transform_1(%arg0: i32, %arg1: i32, %arg2: i32) -> (i32, i32, i32) {
    %c1_i32 = arith.constant 1 : i32
    %0 = arith.muli %arg1, %c1_i32 : i32
    %1 = arith.addi %0, %arg2 : i32
    %c0_i32 = arith.constant 0 : i32
    %c0_i32_0 = arith.constant 0 : i32
    return %arg0, %c0_i32, %1 : i32, i32, i32
  }
  func.func @transform_2(%arg0: i32, %arg1: i32, %arg2: i32) -> (i32, i32) {
    %c0_i32 = arith.constant 0 : i32
    %c0_i32_0 = arith.constant 0 : i32
    %c0_i32_1 = arith.constant 0 : i32
    return %c0_i32, %c0_i32_0 : i32, i32
  }
  func.func @transform_3(%arg0: i32, %arg1: i32, %arg2: i32) -> (i32, i32, i32) {
    %c1_i32 = arith.constant 1 : i32
    %0 = arith.muli %arg0, %c1_i32 : i32
    %1 = arith.addi %0, %arg1 : i32
    %c0_i32 = arith.constant 0 : i32
    %c0_i32_0 = arith.constant 0 : i32
    %c0_i32_1 = arith.constant 0 : i32
    return %1, %c0_i32, %c0_i32_0 : i32, i32, i32
  }
}

</mosaic_0001>

<llo_original>
// kernel: tpu_custom_call.1
$region0: #{tpu_custom_call.1}
  #allocation0 [shape = 'u32[]', space=smem, size = 0x4, offset = 0x4, fixed_abs, tag = 'smem constant byte address 0x4 - core index']
  #allocation1 [shape = 'u32[144,128]{1,0:T(1,128)}', space=vmem, size = 0x12000, scoped, tag = 'internal scratch']
  %s0 = inlined_call_operand.hbm [shape: f32[2,4,256], index: 0, kind: input, shape index: {}]
  %s1 = inlined_call_operand.vmem [shape: s32[2,1,256], index: 1, kind: input, shape index: {}]
  %s2 = inlined_call_operand.vmem [shape: f32[4,1], index: 2, kind: input, shape index: {}]
  %s3 = inlined_call_operand.hbm [shape: f32[2,1,256], index: 3, kind: output, shape index: {}]
  %s4 = sld [smem:[#allocation0]]
  $region53: #{tpu_custom_call.1} parent=0
    _
  %s6 = ssub.s32 1, %s4
  %s7 = scalar_select 0, %s6, %s4
  $region1: #{tpu_custom_call.1} parent=0
    #allocation2 [shape = 'u8[8192]{0}', space=vmem, size = 0x2000, scoped, tag = 'input window, operand 0']
    #allocation3 [shape = 's32[2]{0}', space=sflag, size = 0x8, scoped, tag = 'scoped memory for tpu_custom_call.1']
    #allocation4 [shape = 's32[2]{0}', space=sflag, size = 0x8, scoped, tag = 'scoped memory for tpu_custom_call.1']
    #allocation5 [shape = 'u8[2048]{0}', space=vmem, size = 0x800, scoped, tag = 'output window, operand 0']
    %8 = vsyncpa [#allocation3], 0
    %s9 = scalar_lea.sflag [#allocation3], 1
    %10 = vsyncpa %s9, 0
    %11 = vsyncpa [#allocation4], 0
    %s12 = scalar_lea.sflag [#allocation4], 1
    %13 = vsyncpa %s12, 0
    loop: start=0, step=1, limit=4
    $region2: #{tpu_custom_call.1} parent=1 // loop_pre_header
      _
    $region3: #{tpu_custom_call.1} parent=1 // loop_header
      %s15 = sphi 0, %s19
      %p16 = scmp.ge.s32.totalorder %s15, 4
      %s22 = sphi 0, %s41
      %s23 = sphi 0, %s37
      %s24 = sphi 0, %s33
      %s25 = sphi 0, %s22
      %s26 = sphi 0, %s23
      %s27 = sphi 0, %s24
      %s28 = sphi 0, %s25
      %s29 = sphi 0, %s26
      %s30 = sphi 0, %s27
      %s48 = sphi 0, %s50
      %s51 = sphi 0, %s48
      %s52 = sphi 0, %s51
      %s68 = sphi 0, %s52
      %s78 = sphi 0, %s80
      %s81 = sphi 0, %s78
      %s82 = sphi 0, %s81
      %s98 = sphi 0, %s82
      %s102 = sphi 0, %s102
      %s104 = sphi 0, %s102
      %s105 = sphi 0, %s104
      %s119 = sphi 0, %s105
      %s127 = sphi 0, %s129
      %s130 = sphi 0, %s127
      %s131 = sphi 0, %s130
      %s147 = sphi 0, %s131
    $region4: #{tpu_custom_call.1} parent=1 // loop_header_branch
      %18 = sbr.rel (%p16) target = $region8
    $region5: #{tpu_custom_call.1} parent=1 // loop_body
      %s20 = ssub.s32 %s15, 1
      %s21 = ssub.s32 %s15, 2
      %s31 = sadd.s32 1, %s24
      %p32 = scmp.ge.s32.totalorder %s31, 1
      %s33 = scalar_select %p32, 0, %s31
      %s34 = sadd.s32 1, %s23
      %s35 = scalar_select %p32, %s34, %s23
      %p36 = scmp.ge.s32.totalorder %s35, 1
      %s37 = scalar_select %p36, 0, %s35
      %s38 = sadd.s32 1, %s22
      %s39 = scalar_select %p36, %s38, %s22
      %p40 = scmp.ge.s32.totalorder %s39, 2
      %s41 = scalar_select %p40, 0, %s39
      %s42 = sadd.s32 %s23, %s24
      %s43 = sadd.s32 %s37, %s33
      %s44 = ssub.s32 %s22, %s41
      %s45 = ssub.s32 %s42, %s43
      %s46 = sor.u32 %s44, %s45
      %p47 = scmp.eq.s32.totalorder %s46, 0
      %s49 = sadd.s32 %s48, 1
      %s50 = scalar_select %p47, %s48, %s49
      %p53 = pneg %p47
      %p54 = scmp.eq.s32.totalorder %s15, 1
      %p55 = por %p53, %p54
      %p56 = scmp.ne.s32.totalorder %s48, %s51
      %p57 = scmp.eq.s32.totalorder %s15, 0
      %p58 = por %p56, %p57
      %p59 = scmp.ne.s32.totalorder %s48, %s51
      %p60 = scmp.eq.s32.totalorder %s20, 1
      %p61 = por %p59, %p60
      %p62 = scmp.ne.s32.totalorder %s51, %s52
      %p63 = scmp.eq.s32.totalorder %s20, 0
      %p64 = por %p62, %p63
      %p65 = scmp.ne.s32.totalorder %s51, %s52
      %p66 = scmp.eq.s32.totalorder %s21, 1
      %p67 = por %p65, %p66
      %p69 = scmp.ne.s32.totalorder %s52, %s68
      %p70 = scmp.eq.s32.totalorder %s21, 0
      %p71 = por %p69, %p70
      %s72 = sadd.s32 %s23, %s24
      %s73 = sadd.s32 %s37, %s33
      %s74 = ssub.s32 %s22, %s41
      %s75 = ssub.s32 %s72, %s73
      %s76 = sor.u32 %s74, %s75
      %p77 = scmp.eq.s32.totalorder %s76, 0
      %s79 = sadd.s32 %s78, 1
      %s80 = scalar_select %p77, %s78, %s79
      %p83 = pneg %p77
      %p84 = scmp.eq.s32.totalorder %s15, 1
      %p85 = por %p83, %p84
      %p86 = scmp.ne.s32.totalorder %s78, %s81
      %p87 = scmp.eq.s32.totalorder %s15, 0
      %p88 = por %p86, %p87
      %p89 = scmp.ne.s32.totalorder %s78, %s81
      %p90 = scmp.eq.s32.totalorder %s20, 1
      %p91 = por %p89, %p90
      %p92 = scmp.ne.s32.totalorder %s81, %s82
      %p93 = scmp.eq.s32.totalorder %s20, 0
      %p94 = por %p92, %p93
      %p95 = scmp.ne.s32.totalorder %s81, %s82
      %p96 = scmp.eq.s32.totalorder %s21, 1
      %p97 = por %p95, %p96
      %p99 = scmp.ne.s32.totalorder %s82, %s98
      %p100 = scmp.eq.s32.totalorder %s21, 0
      %p101 = por %p99, %p100
      %s103 = sadd.s32 %s102, 1
      %p106 = scmp.eq.s32.totalorder %s15, 1
      %p107 = scmp.ne.s32.totalorder %s102, %s104
      %p108 = scmp.eq.s32.totalorder %s15, 0
      %p109 = por %p107, %p108
      %p110 = scmp.ne.s32.totalorder %s102, %s104
      %p111 = scmp.eq.s32.totalorder %s20, 1
      %p112 = por %p110, %p111
      %p113 = scmp.ne.s32.totalorder %s104, %s105
      %p114 = scmp.eq.s32.totalorder %s20, 0
      %p115 = por %p113, %p114
      %p116 = scmp.ne.s32.totalorder %s104, %s105
      %p117 = scmp.eq.s32.totalorder %s21, 1
      %p118 = por %p116, %p117
      %p120 = scmp.ne.s32.totalorder %s105, %s119
      %p121 = scmp.eq.s32.totalorder %s21, 0
      %p122 = por %p120, %p121
      %s123 = sadd.s32 %s22, %s23
      %s124 = sadd.s32 %s41, %s37
      %s125 = ssub.s32 %s123, %s124
      %p126 = scmp.eq.s32.totalorder %s125, 0
      %s128 = sadd.s32 %s127, 1
      %s129 = scalar_select %p126, %s127, %s128
      %p132 = pneg %p126
      %p133 = scmp.eq.s32.totalorder %s15, 1
      %p134 = por %p132, %p133
      %p135 = scmp.ne.s32.totalorder %s127, %s130
      %p136 = scmp.eq.s32.totalorder %s15, 0
      %p137 = por %p135, %p136
      %p138 = scmp.ne.s32.totalorder %s127, %s130
      %p139 = scmp.eq.s32.totalorder %s20, 1
      %p140 = por %p138, %p139
      %p141 = scmp.ne.s32.totalorder %s130, %s131
      %p142 = scmp.eq.s32.totalorder %s20, 0
      %p143 = por %p141, %p142
      %p144 = scmp.ne.s32.totalorder %s130, %s131
      %p145 = scmp.eq.s32.totalorder %s21, 1
      %p146 = por %p144, %p145
      %p148 = scmp.ne.s32.totalorder %s131, %s147
      %p149 = scmp.eq.s32.totalorder %s21, 0
      %p150 = por %p148, %p149
      %p151 = scmp.le.s32.totalorder 1, %s15
      %p152 = scmp.lt.s32.totalorder %s15, 3
      %p153 = pnand %p151, %p152
      %p154 = pneg %p153
      // Predicated region
      $region9: #{tpu_custom_call.1} parent=5 // pred_check
        _
      $region10: #{tpu_custom_call.1} parent=5 // pred_check_branch
        %156 = sbr.rel (%p153) target = $region12
      $region11: #{tpu_custom_call.1} parent=5 // pred_region
        %s157 = ssub.s32 %s15, 1
        // Predicated region
        $region13: #{tpu_custom_call.1} parent=11 // pred_check
          %p158 = pneg %p115
        $region14: #{tpu_custom_call.1} parent=11 // pred_check_branch
          %160 = sbr.rel (%p158) target = $region16
        $region15: #{tpu_custom_call.1} parent=11 // pred_region
          _
        $region16: #{tpu_custom_call.1} parent=11 // pred_fallthru
          _
      $region12: #{tpu_custom_call.1} parent=5 // pred_fallthru
        _
      %p161 = scmp.lt.s32.totalorder %s15, 2
      // Predicated region
      $region17: #{tpu_custom_call.1} parent=5 // pred_check
        %p162 = pneg %p161
      $region18: #{tpu_custom_call.1} parent=5 // pred_check_branch
        %164 = sbr.rel (%p162) target = $region20
      $region19: #{tpu_custom_call.1} parent=5 // pred_region
        // Predicated region
        $region21: #{tpu_custom_call.1} parent=19 // pred_check
          %p165 = pneg %p58
        $region22: #{tpu_custom_call.1} parent=19 // pred_check_branch
          %167 = sbr.rel (%p165) target = $region24
        $region23: #{tpu_custom_call.1} parent=19 // pred_region
          %s168 = sand.u32 %s48, 1
          %s169 = scalar_lea.sflag [#allocation3], %s168
          %s170 = sand.u32 %s48, 1
          %s171 = smul.addr %s170, 8
          %s172 = scalar_lea.vmem [#allocation2], %s171
          %s173 = sadd.s32 %s23, %s24
          %s174 = smul.u32 2, %s173
          %s176 = ssub.s32 128, 128
          %177 = vsyncadd %s169, %s176
          %s178 = smul.addr %s22, 2
          %s179 = sadd.s32 %s174, %s178
          %s180 = smul.addr %s179, 64
          %s181 = scalar_lea.hbm %s0, %s180
          %s183 = sshll.u32 %s172, 4
          %s184 = int_to_ptr.vmem [resolvable:$true] %s183
          %186 = dma.hbm_to_vmem [thread:$0]  %s181, 128, %s184, %s169
        $region24: #{tpu_custom_call.1} parent=19 // pred_fallthru
          _
        // Predicated region
        $region25: #{tpu_custom_call.1} parent=19 // pred_check
          %p187 = pneg %p88
        $region26: #{tpu_custom_call.1} parent=19 // pred_check_branch
          %189 = sbr.rel (%p187) target = $region28
        $region27: #{tpu_custom_call.1} parent=19 // pred_region
          %s190 = sadd.s32 %s23, %s24
          %s191 = smul.u32 2, %s190
          %p192 = scmp.lt.s32.totalorder %s22, 1
          %s193 = scalar_select %p192, %s22, 1
          %p194 = scmp.lt.s32.totalorder %s191, 1
          %s195 = scalar_select %p194, %s191, 1
          %s196 = smul.addr %s193, 2
          %s197 = sadd.s32 %s195, %s196
          %s198 = scalar_lea.vmem %s1, %s197
          %s199 = sadd.s32 %s23, %s24
          %s200 = smul.u32 2, %s199
        $region28: #{tpu_custom_call.1} parent=19 // pred_fallthru
          _
      $region20: #{tpu_custom_call.1} parent=5 // pred_fallthru
        _
      %p201 = scmp.le.s32.totalorder 1, %s15
      %p202 = scmp.lt.s32.totalorder %s15, 3
      %p203 = pnand %p201, %p202
      %p204 = pneg %p203
      // Predicated region
      $region29: #{tpu_custom_call.1} parent=5 // pred_check
        _
      $region30: #{tpu_custom_call.1} parent=5 // pred_check_branch
        %206 = sbr.rel (%p203) target = $region32
      $region31: #{tpu_custom_call.1} parent=5 // pred_region
        %s207 = ssub.s32 %s15, 1
        %s208 = sand.u32 %s51, 1
        %s209 = scalar_lea.sflag [#allocation3], %s208
        %s210 = sand.u32 %s51, 1
        %s211 = smul.addr %s210, 8
        %s212 = scalar_lea.vmem [#allocation2], %s211
        // Predicated region
        $region33: #{tpu_custom_call.1} parent=31 // pred_check
          %p213 = pneg %p64
        $region34: #{tpu_custom_call.1} parent=31 // pred_check_branch
          %215 = sbr.rel (%p213) target = $region36
        $region35: #{tpu_custom_call.1} parent=31 // pred_region
          %216 = dma.done %s209, 128
        $region36: #{tpu_custom_call.1} parent=31 // pred_fallthru
          _
        %s217 = sand.u32 %s51, 1
        %s218 = scalar_lea.sflag [#allocation3], %s217
        %s219 = sand.u32 %s51, 1
        %s220 = smul.addr %s219, 8
        %s221 = scalar_lea.vmem [#allocation2], %s220
        %p222 = pneg %p64
        %p223 = pneg %p61
        %s224 = sadd.s32 %s26, %s27
        %s225 = smul.u32 2, %s224
        %p226 = scmp.lt.s32.totalorder %s25, 1
        %s227 = scalar_select %p226, %s25, 1
        %p228 = scmp.lt.s32.totalorder %s225, 1
        %s229 = scalar_select %p228, %s225, 1
        %s230 = smul.addr %s227, 2
        %s231 = sadd.s32 %s229, %s230
        %s232 = scalar_lea.vmem %s1, %s231
        %p233 = pneg %p94
        %p234 = pneg %p91
        %p235 = pneg %p115
        %p236 = pneg %p112
        %p237 = pneg %p143
        %p238 = pneg %p140
        %s239 = sand.u32 %s130, 1
        %s240 = scalar_lea.sflag [#allocation4], %s239
        %s241 = sand.u32 %s130, 1
        %s242 = smul.addr %s241, 2
        %s243 = scalar_lea.vmem [#allocation5], %s242
        %s244 = sadd.s32 %s26, %s27
        %s245 = smul.u32 2, %s244
        %s246 = sadd.s32 %s26, %s27
        %s247 = smul.u32 2, %s246
        %p248 = scmp.lt.s32.totalorder %s25, 1
        %s249 = scalar_select %p248, %s25, 1
        %p250 = scmp.lt.s32.totalorder %s247, 1
        %s251 = scalar_select %p250, %s247, 1
        %s252 = smul.addr %s249, 2
        %s253 = sadd.s32 %s251, %s252
        %s254 = scalar_lea.vmem %s1, %s253
        %s255 = sadd.s32 %s26, %s27
        %s256 = smul.u32 2, %s255
        %s257 = sadd.s32 %s25, %s26
        %p258 = scmp.eq.s32.totalorder %s27, 0
        // Predicated region
        $region37: #{tpu_custom_call.1} parent=31 // pred_check
          %p259 = pneg %p258
        $region38: #{tpu_custom_call.1} parent=31 // pred_check_branch
          %261 = sbr.rel (%p259) target = $region40
        $region39: #{tpu_custom_call.1} parent=31 // pred_region
          %v262 = vlaneseq
          %vm263 = vcmp.ge.s32.totalorder %v262, 0
          %vm264 = vcmp.lt.s32.totalorder %v262, 256
          %vm265 = vmand %vm263, %vm264
          %266 = vst.msk [vmem:[%s243] sm:$0x3] %vm265, 0.0
        $region40: #{tpu_custom_call.1} parent=31 // pred_fallthru
          _
        %v267 = vld [vmem:[%s212] sm:$0xff]
        %v268 = vld [vmem:[%s254] sm:$0x3]
        %v270 = vcombine.high %v267, %v267
        %vm272 = vcmask 1043456
        %v273 = vsel %vm272, %v267, -inf
        %v274 = vrot.slane %v273, 4
        %v275 = vmax.f32 %v273, %v274
        %v276 = vrot.slane %v275, 2
        %v277 = vmax.f32 %v275, %v276
        %v278 = vrot.slane %v277, 1
        %v279 = vmax.f32 %v277, %v278
        %v280 = vsel %vm272, %v270, -inf
        %v281 = vrot.slane %v280, 4
        %v282 = vmax.f32 %v280, %v281
        %v283 = vrot.slane %v282, 2
        %v284 = vmax.f32 %v282, %v283
        %v285 = vrot.slane %v284, 1
        %v286 = vmax.f32 %v284, %v285
        %v289 = vcombine.low %v279, %v286
        %v291 = vsub.f32 %v267, %v289
        %v292 = vmul.f32 %v291, 1.442695
        %v293 = vpow.pop %v292
        %v295 = vcombine.high %v293, %v293
        %v297 = vsel %vm272, %v293, 0.0
        %v298 = vrot.slane %v297, 4
        %v299 = vadd.f32 %v297, %v298
        %v300 = vrot.slane %v299, 2
        %v301 = vadd.f32 %v299, %v300
        %v302 = vrot.slane %v301, 1
        %v303 = vadd.f32 %v301, %v302
        %v304 = vsel %vm272, %v295, 0.0
        %v305 = vrot.slane %v304, 4
        %v306 = vadd.f32 %v304, %v305
        %v307 = vrot.slane %v306, 2
        %v308 = vadd.f32 %v306, %v307
        %v309 = vrot.slane %v308, 1
        %v310 = vadd.f32 %v308, %v309
        %v311 = vrcp.pop %v303
        %v312 = vrcp.pop %v310
        %v315 = vcombine.low %v311, %v312
        %v317 = vmul.f32 %v293, %v315
        %v318 = vsub.f32 1.0, %v317
        %v319 = vlog2.pop %v303
        %v320 = vmul.f32 %v319, 0.6931472
        %v321 = vlog2.pop %v310
        %v322 = vmul.f32 %v321, 0.6931472
        %v325 = vcombine.low %v320, %v322
        %v327 = vsub.f32 %v291, %v325
        %v328 = vmul.f32 %v318, %v318
        %v329 = vmul.f32 %v328, %v327
        %v330 = vld [vmem:[%s2] sm:$0xf]
        %332 = vset.pattern.permute.xlu0 0
        %333 = vperm.xlu0 %332, %v330
        %v334 = vpop.permute.xlu0 %333
        %v336 = vunpack.c.l.s4 839922192
        %v337 = vunpack.c.0.s8 %v336
        %v338 = vlaneseq
        %v339 = vshrl.u32 %v338, 7
        %v340 = vsub.s32 %v337, %v339
        %v341 = vrot.slane %v334, %v340
        %v343 = vmul.f32 %v329, %v341
        %v344 = vlaneseq
        %v345 = vshrl.u32 %v344, 7
        %v346 = vlaneseq
        %v347 = vshrl.u32 %v346, 7
        %v348 = vsub.s32 0, %v347
        %v349 = vrot.slane %v268, %v348
        %v350 = vlaneseq
        %v351 = vshrl.u32 %v350, 7
        %v352 = vsub.s32 1, %v351
        %v353 = vrot.slane %v268, %v352
        %vm354 = vcmp.eq.s32.totalorder %v345, %v349
        %vm355 = vcmp.eq.s32.totalorder %v345, %v353
        %v357 = vcombine.high %v343, %v343
        %v359 = vsel %vm354, %v343, 0.0
        %v360 = vsel %vm355, %v357, 0.0
        %v361 = vsel %vm272, %v359, 0.0
        %v362 = vrot.slane %v361, 4
        %v363 = vadd.f32 %v361, %v362
        %v364 = vrot.slane %v363, 2
        %v365 = vadd.f32 %v363, %v364
        %v366 = vrot.slane %v365, 1
        %v367 = vadd.f32 %v365, %v366
        %v368 = vsel %vm272, %v360, 0.0
        %v369 = vrot.slane %v368, 4
        %v370 = vadd.f32 %v368, %v369
        %v371 = vrot.slane %v370, 2
        %v372 = vadd.f32 %v370, %v371
        %v373 = vrot.slane %v372, 1
        %v374 = vadd.f32 %v372, %v373
        %v375 = vsel %vm272, %v343, 0.0
        %v376 = vrot.slane %v375, 4
        %v377 = vadd.f32 %v375, %v376
        %v378 = vrot.slane %v377, 2
        %v379 = vadd.f32 %v377, %v378
        %v380 = vrot.slane %v379, 1
        %v381 = vadd.f32 %v379, %v380
        %v382 = vsel %vm272, %v357, 0.0
        %v383 = vrot.slane %v382, 4
        %v384 = vadd.f32 %v382, %v383
        %v385 = vrot.slane %v384, 2
        %v386 = vadd.f32 %v384, %v385
        %v387 = vrot.slane %v386, 1
        %v388 = vadd.f32 %v386, %v387
        %v389 = vmul.f32 %v381, 1e-08
        %v390 = vmul.f32 %v388, 1e-08
        %v391 = vadd.f32 %v367, %v389
        %v392 = vadd.f32 %v374, %v390
        %v393 = vld [vmem:[%s243] sm:$0x3]
        %v396 = vcombine.low %v391, %v392
        %v398 = vunpack.c.l.s4 1966171168
        %v399 = vunpack.c.0.s8 %v398
        %v400 = vlaneseq
        %v401 = vshrl.u32 %v400, 7
        %v402 = vsub.s32 %v399, %v401
        %v403 = vrot.slane %v396, %v402
        %v405 = vunpack.c.l.s4 1966171168
        %v406 = vunpack.c.0.s8 %v405
        %v407 = vlaneseq
        %v408 = vshrl.u32 %v407, 7
        %v409 = vsub.s32 %v406, %v408
        %v410 = vrot.slane %v403, %v409
        %v412 = vadd.f32 %v393, %v410
        %v413 = vlaneseq
        %vm414 = vcmp.ge.s32.totalorder %v413, 0
        %vm415 = vcmp.lt.s32.totalorder %v413, 256
        %vm416 = vmand %vm414, %vm415
        %417 = vst.msk [vmem:[%s243] sm:$0x3] %vm416, %v412
        %s418 = sand.u32 %s130, 1
        %s419 = scalar_lea.sflag [#allocation4], %s418
        %s420 = sand.u32 %s130, 1
        %s421 = smul.addr %s420, 2
        %s422 = scalar_lea.vmem [#allocation5], %s421
        // Predicated region
        $region41: #{tpu_custom_call.1} parent=31 // pred_check
          %p423 = pneg %p140
        $region42: #{tpu_custom_call.1} parent=31 // pred_check_branch
          %425 = sbr.rel (%p423) target = $region44
        $region43: #{tpu_custom_call.1} parent=31 // pred_region
          %s426 = sadd.s32 %s25, %s26
          %s428 = ssub.s32 32, 32
          %429 = vsyncadd %s419, %s428
          %s430 = smul.addr %s426, 2
          %s431 = smul.addr %s430, 16
          %s432 = scalar_lea.hbm %s3, %s431
          %s434 = sshll.u32 %s422, 4
          %s435 = int_to_ptr.vmem [resolvable:$true] %s434
          %437 = dma.vmem_to_hbm [thread:$0]  %s435, 32, %s432, %s419
        $region44: #{tpu_custom_call.1} parent=31 // pred_fallthru
          _
      $region32: #{tpu_custom_call.1} parent=5 // pred_fallthru
        _
      %p438 = scmp.le.s32.totalorder 2, %s15
      // Predicated region
      $region45: #{tpu_custom_call.1} parent=5 // pred_check
        %p439 = pneg %p438
      $region46: #{tpu_custom_call.1} parent=5 // pred_check_branch
        %441 = sbr.rel (%p439) target = $region48
      $region47: #{tpu_custom_call.1} parent=5 // pred_region
        %s442 = ssub.s32 %s15, 2
        // Predicated region
        $region49: #{tpu_custom_call.1} parent=47 // pred_check
          %p443 = pneg %p146
        $region50: #{tpu_custom_call.1} parent=47 // pred_check_branch
          %445 = sbr.rel (%p443) target = $region52
        $region51: #{tpu_custom_call.1} parent=47 // pred_region
          %s446 = sand.u32 %s131, 1
          %s447 = scalar_lea.sflag [#allocation4], %s446
          %s448 = sand.u32 %s131, 1
          %s449 = smul.addr %s448, 2
          %s450 = scalar_lea.vmem [#allocation5], %s449
          %451 = dma.done %s447, 32
        $region52: #{tpu_custom_call.1} parent=47 // pred_fallthru
          _
      $region48: #{tpu_custom_call.1} parent=5 // pred_fallthru
        _
    $region6: #{tpu_custom_call.1} parent=1 // loop_footer
      %s19 = sadd.s32 1, %s15
    $region7: #{tpu_custom_call.1} parent=1 // loop_footer_branch
      %14 = sbr.rel target = $region3
    $region8: #{tpu_custom_call.1} parent=1 // loop_exit
      _
    %452 = vsyncpa [#allocation3], 1
    %s453 = scalar_lea.sflag [#allocation3], 1
    %454 = vsyncpa %s453, 1
    %455 = vsyncpa [#allocation4], 1
    %s456 = scalar_lea.sflag [#allocation4], 1
    %457 = vsyncpa %s456, 1

</llo_original>
